<compile_context>
chip_gen: v7x
topology: tpu7x:2x2x1
jax: 0.10.0
libtpu: 0.0.40
codegen_flags: <defaults>
</compile_context>

<pallas_src>
import functools

import jax
import jax.numpy as jnp
from jax import lax
from jax.experimental import pallas as pl
from jax.experimental.pallas import tpu as pltpu

EPS = 1e-5  # nn.BatchNorm2d default eps


def _dot_bn_relu_kernel(w_ref, p_ref, gbb_ref, o_ref, *, N, HW):
    """Fused (Conv-as-matmul) + BatchNorm2d(train) + ReLU, single invocation.

    w_ref:   (Cout, KH*KW*Cin)   conv weight, rows ordered (kh, kw, ci), bf16
    p_ref:   (KH*KW*Cin, N*HW)   im2col patch matrix (built in the wrapper), bf16
    gbb_ref: (Cout, 3)           [:,0]=BN gamma, [:,1]=BN beta, [:,2]=conv bias, f32
    o_ref:   (N, Cout, HW)       output (NCHW with flattened spatial), f32
    """
    # --- Conv2d as ONE fused MXU contraction (K = KH*KW*Cin), f32 accumulation.
    acc = jnp.dot(w_ref[...], p_ref[...],
                  preferred_element_type=jnp.float32)            # (Cout, N*HW) f32

    gbb = gbb_ref[...]                                           # (Cout, 3) f32
    acc = acc + gbb[:, 2:3]                                      # conv bias

    # --- BatchNorm2d training-mode forward (biased stats over N,H,W):
    # single-pass sum / sum-of-squares in f32, folded into per-channel
    # scale/shift.  Reductions are cheap lane-reduces over 4 dense vregs.
    inv_cnt = 1.0 / acc.shape[1]
    mean = jnp.sum(acc, axis=1, keepdims=True) * inv_cnt         # (Cout, 1)
    ex2 = jnp.sum(acc * acc, axis=1, keepdims=True) * inv_cnt    # E[x^2]
    var = ex2 - mean * mean                                      # biased variance
    scale = gbb[:, 0:1] * lax.rsqrt(var + EPS)                   # gamma / sqrt(var+eps)
    shift = gbb[:, 1:2] - mean * scale                           # beta - mean*scale

    # --- fused BN affine + ReLU, then lane-dense unmasked stores (HW = 256).
    y = jnp.maximum(acc * scale + shift, 0.0)                    # (Cout, N*HW)
    for n in range(N):                                           # N is tiny & static
        o_ref[n] = y[:, n * HW:(n + 1) * HW]                     # (Cout, HW)


def conv_bn_relu(x_nchw, weight_oihw, bias, gamma, beta, *, padding=1):
    """Wrapper: pad + im2col + tiny weight repack in XLA; dot/BN/ReLU in Pallas."""
    N, Cin, H, W = x_nchw.shape
    Cout, Cin_w, KH, KW = weight_oihw.shape
    assert Cin == Cin_w, "groups != 1 not supported"
    Ho = H + 2 * padding - KH + 1   # stride=1, dilation=1
    Wo = W + 2 * padding - KW + 1
    HW = Ho * Wo

    # --- wrapper-side im2col (XLA fuses pad + slices + reshape + bf16 cast) ---
    x_pad = jnp.pad(x_nchw.astype(jnp.bfloat16),
                    ((0, 0), (0, 0), (padding, padding), (padding, padding)))
    taps = [x_pad[:, :, kh:kh + Ho, kw:kw + Wo]                  # (N, Cin, Ho, Wo)
            for kh in range(KH) for kw in range(KW)]
    patch = jnp.stack(taps, axis=1)                              # (N, KH*KW, Cin, Ho, Wo)
    patch = patch.reshape(N, KH * KW * Cin, HW)                  # K rows ordered (kh,kw,ci)
    patch = jnp.transpose(patch, (1, 0, 2)).reshape(KH * KW * Cin, N * HW)

    # OIHW -> (Cout, KH*KW*Cin), rows ordered (kh, kw, ci) to match the patch.
    w2 = jnp.transpose(weight_oihw, (0, 2, 3, 1)).reshape(
        Cout, KH * KW * Cin).astype(jnp.bfloat16)
    # Pack BN gamma/beta + conv bias into a single small (Cout, 3) f32 VMEM tile.
    gbb = jnp.stack([gamma, beta, bias], axis=1).astype(jnp.float32)

    kernel = functools.partial(_dot_bn_relu_kernel, N=N, HW=HW)

    # Whole problem (~60 KiB) fits comfortably in VMEM -> single gridless call.
    # TODO(synk): at real S2ENet sizes add a spatial/batch grid with BlockSpec
    # tiling, dimension_semantics=("parallel", ..., "arbitrary") (second TC on
    # v7x), and size tiles against v7x's 64 MiB VMEM with double-buffering.
    out = pl.pallas_call(
        kernel,
        out_shape=jax.ShapeDtypeStruct((N, Cout, HW), jnp.float32),
        in_specs=[pl.BlockSpec(memory_space=pltpu.MemorySpace.VMEM)] * 3,
        out_specs=pl.BlockSpec(memory_space=pltpu.MemorySpace.VMEM),
    )(w2, patch, gbb)

    # Free metadata reshape back to the PyTorch NCHW convention.
    return out.reshape(N, Cout, Ho, Wo)


def _reference(x_nchw, weight_oihw, bias, gamma, beta, *, padding=1):
    """Pure-JAX f32 reference with the exact PyTorch forward semantics."""
    conv = lax.conv_general_dilated(
        x_nchw, weight_oihw, window_strides=(1, 1),
        padding=[(padding, padding), (padding, padding)],
        dimension_numbers=("NCHW", "OIHW", "NCHW"),
        precision=lax.Precision.HIGHEST)
    conv = conv + bias.reshape(1, -1, 1, 1)
    mean = jnp.mean(conv, axis=(0, 2, 3), keepdims=True)
    var = jnp.mean((conv - mean) ** 2, axis=(0, 2, 3), keepdims=True)
    xhat = (conv - mean) / jnp.sqrt(var + EPS)
    y = xhat * gamma.reshape(1, -1, 1, 1) + beta.reshape(1, -1, 1, 1)
    return jnp.maximum(y, 0.0)


if __name__ == "__main__":
    # Module config: conv_bn_relu(in_channels=4, out_channels=8, kernel_size=3,
    #                             stride=1, padding=1, bias=True)
    N, Cin, H, W = 2, 4, 16, 16
    Cout, K, padding = 8, 3, 1

    key = jax.random.PRNGKey(0)
    kx, kw, kb, kg, kbe = jax.random.split(key, 5)

    x = jax.random.normal(kx, (N, Cin, H, W), dtype=jnp.float32)
    weight = jax.random.normal(kw, (Cout, Cin, K, K), dtype=jnp.float32) * 0.1
    bias = jax.random.normal(kb, (Cout,), dtype=jnp.float32) * 0.05
    gamma = 1.0 + 0.1 * jax.random.normal(kg, (Cout,), dtype=jnp.float32)
    beta = 0.1 * jax.random.normal(kbe, (Cout,), dtype=jnp.float32)

    out = conv_bn_relu(x, weight, bias, gamma, beta, padding=padding)
    out = jax.block_until_ready(out)

    ref = _reference(x, weight, bias, gamma, beta, padding=padding)
    # Tolerance accounts for bf16 MXU operands (f32 accumulation) feeding the
    # BN normalization; observed max abs err is ~1e-3 level.
    if not jnp.allclose(out, ref, atol=3e-2, rtol=3e-2):
        raise AssertionError(
            f"Pallas output mismatch, max abs err = {jnp.max(jnp.abs(out - ref))}")

    print("KERNEL_OK")
</pallas_src>

<mosaic_0001>
module attributes {stable_mosaic.version = 11 : i64} {
  func.func @_dot_bn_relu_kernel(%arg0: memref<8x36xbf16, #tpu.memory_space<vmem>>, %arg1: memref<36x512xbf16, #tpu.memory_space<vmem>>, %arg2: memref<8x3xf32, #tpu.memory_space<vmem>>, %arg3: memref<2x8x256xf32, #tpu.memory_space<vmem>>) attributes {dimension_semantics = [], scalar_prefetch = 0 : i64, scratch_operands = 0 : i64, tpu.core_type = #tpu.core_type<tc>} {
    %c0 = arith.constant 0 : index
    %c0_0 = arith.constant 0 : index
    %0 = vector.load %arg0[%c0, %c0_0] : memref<8x36xbf16, #tpu.memory_space<vmem>>, vector<8x36xbf16>
    %c0_1 = arith.constant 0 : index
    %c0_2 = arith.constant 0 : index
    %1 = vector.load %arg1[%c0_1, %c0_2] : memref<36x512xbf16, #tpu.memory_space<vmem>>, vector<36x512xbf16>
    %cst = arith.constant dense<0.000000e+00> : vector<8x512xf32>
    %2 = tpu.matmul %0, %1, %cst {dimension_numbers = #tpu.dot_dimension_numbers<[1], [0], [0], [1], [0, 0, 1, 1], [], []>} : vector<8x36xbf16>, vector<36x512xbf16>, vector<8x512xf32> -> vector<8x512xf32>
    %c0_3 = arith.constant 0 : index
    %c0_4 = arith.constant 0 : index
    %3 = vector.load %arg2[%c0_3, %c0_4] : memref<8x3xf32, #tpu.memory_space<vmem>>, vector<8x3xf32>
    %4 = vector.extract_strided_slice %3 {offsets = [0, 2], sizes = [8, 1], strides = [1, 1]} : vector<8x3xf32> to vector<8x1xf32>
    %5 = vector.broadcast %4 : vector<8x1xf32> to vector<8x512xf32>
    %6 = arith.addf %2, %5 : vector<8x512xf32>
    %cst_5 = arith.constant dense<0.000000e+00> : vector<8xf32>
    %7 = vector.multi_reduction <add>, %6, %cst_5 [1] : vector<8x512xf32> to vector<8xf32>
    %8 = vector.shape_cast %7 : vector<8xf32> to vector<8x1xf32>
    %cst_6 = arith.constant 0.001953125 : f32
    %9 = vector.broadcast %cst_6 : f32 to vector<8x1xf32>
    %10 = arith.mulf %8, %9 : vector<8x1xf32>
    %11 = arith.mulf %6, %6 : vector<8x512xf32>
    %cst_7 = arith.constant dense<0.000000e+00> : vector<8xf32>
    %12 = vector.multi_reduction <add>, %11, %cst_7 [1] : vector<8x512xf32> to vector<8xf32>
    %13 = vector.shape_cast %12 : vector<8xf32> to vector<8x1xf32>
    %cst_8 = arith.constant 0.001953125 : f32
    %14 = vector.broadcast %cst_8 : f32 to vector<8x1xf32>
    %15 = arith.mulf %13, %14 : vector<8x1xf32>
    %16 = arith.mulf %10, %10 : vector<8x1xf32>
    %17 = arith.subf %15, %16 : vector<8x1xf32>
    %18 = vector.extract_strided_slice %3 {offsets = [0, 0], sizes = [8, 1], strides = [1, 1]} : vector<8x3xf32> to vector<8x1xf32>
    %cst_9 = arith.constant 9.99999974E-6 : f32
    %19 = vector.broadcast %cst_9 : f32 to vector<8x1xf32>
    %20 = arith.addf %17, %19 : vector<8x1xf32>
    %21 = math.rsqrt %20 : vector<8x1xf32>
    %22 = arith.mulf %18, %21 : vector<8x1xf32>
    %23 = vector.extract_strided_slice %3 {offsets = [0, 1], sizes = [8, 1], strides = [1, 1]} : vector<8x3xf32> to vector<8x1xf32>
    %24 = arith.mulf %10, %22 : vector<8x1xf32>
    %25 = arith.subf %23, %24 : vector<8x1xf32>
    %26 = vector.broadcast %22 : vector<8x1xf32> to vector<8x512xf32>
    %27 = arith.mulf %6, %26 : vector<8x512xf32>
    %28 = vector.broadcast %25 : vector<8x1xf32> to vector<8x512xf32>
    %29 = arith.addf %27, %28 : vector<8x512xf32>
    %cst_10 = arith.constant 0.000000e+00 : f32
    %30 = vector.broadcast %cst_10 : f32 to vector<8x512xf32>
    %31 = arith.maximumf %29, %30 : vector<8x512xf32>
    %32 = vector.extract_strided_slice %31 {offsets = [0, 0], sizes = [8, 256], strides = [1, 1]} : vector<8x512xf32> to vector<8x256xf32>
    %c0_11 = arith.constant 0 : index
    %c0_12 = arith.constant 0 : index
    %c0_13 = arith.constant 0 : index
    %33 = vector.load %arg3[%c0_11, %c0_12, %c0_13] : memref<2x8x256xf32, #tpu.memory_space<vmem>>, vector<1x8x256xf32>
    %34 = vector.shape_cast %33 : vector<1x8x256xf32> to vector<8x256xf32>
    %35 = vector.shape_cast %32 : vector<8x256xf32> to vector<1x8x256xf32>
    tpu.vector_store %arg3[%c0_11, %c0_12, %c0_13], %35 {strides = array<i32>} : memref<2x8x256xf32, #tpu.memory_space<vmem>>, vector<1x8x256xf32>,
    %36 = vector.extract_strided_slice %31 {offsets = [0, 256], sizes = [8, 256], strides = [1, 1]} : vector<8x512xf32> to vector<8x256xf32>
    %c1 = arith.constant 1 : index
    %c0_14 = arith.constant 0 : index
    %c0_15 = arith.constant 0 : index
    %37 = vector.load %arg3[%c1, %c0_14, %c0_15] : memref<2x8x256xf32, #tpu.memory_space<vmem>>, vector<1x8x256xf32>
    %38 = vector.shape_cast %37 : vector<1x8x256xf32> to vector<8x256xf32>
    %39 = vector.shape_cast %36 : vector<8x256xf32> to vector<1x8x256xf32>
    tpu.vector_store %arg3[%c1, %c0_14, %c0_15], %39 {strides = array<i32>} : memref<2x8x256xf32, #tpu.memory_space<vmem>>, vector<1x8x256xf32>,
    return
  }
}

</mosaic_0001>

<llo_original>
// kernel: tpu_custom_call.1
$region0: #{tpu_custom_call.1}
  #allocation0 [shape = 'u32[]', space=smem, size = 0x4, offset = 0x4, fixed_abs, tag = 'smem constant byte address 0x4 - core index']
  #allocation1 [shape = 'u32[144,128]{1,0:T(1,128)}', space=vmem, size = 0x12000, scoped, tag = 'internal scratch']
  %s0 = inlined_call_operand.vmem [shape: bf16[8,36], index: 0, kind: input, shape index: {}]
  %s1 = inlined_call_operand.hbm [shape: bf16[36,512], index: 1, kind: input, shape index: {}]
  %s2 = inlined_call_operand.vmem [shape: f32[8,3], index: 2, kind: input, shape index: {}]
  %s3 = inlined_call_operand.hbm [shape: f32[2,8,256], index: 3, kind: output, shape index: {}]
  %s4 = sld [smem:[#allocation0]]
  $region26: #{tpu_custom_call.1} parent=0
    _
  %s6 = ssub.s32 1, %s4
  %s7 = scalar_select 0, %s6, %s4
  $region1: #{tpu_custom_call.1} parent=0
    #allocation2 [shape = 'u8[40960]{0}', space=vmem, size = 0xa000, scoped, tag = 'input window, operand 1, single buffered']
    #allocation3 [shape = 's32[1]{0}', space=sflag, size = 0x4, scoped, tag = 'scoped memory for tpu_custom_call.1']
    #allocation4 [shape = 's32[1]{0}', space=sflag, size = 0x4, scoped, tag = 'scoped memory for tpu_custom_call.1']
    #allocation5 [shape = 'u8[16384]{0}', space=vmem, size = 0x4000, scoped, tag = 'output window, operand 0, single buffered']
    %8 = vsyncpa [#allocation3], 0
    %9 = vsyncpa [#allocation4], 0
    // Predicated region
    $region2: #{tpu_custom_call.1} parent=1 // pred_check
      _
    $region3: #{tpu_custom_call.1} parent=1 // pred_check_branch
      %11 = sbr.rel (0) target = $region5
    $region4: #{tpu_custom_call.1} parent=1 // pred_region
      _
    $region5: #{tpu_custom_call.1} parent=1 // pred_fallthru
      _
    // Predicated region
    $region6: #{tpu_custom_call.1} parent=1 // pred_check
      _
    $region7: #{tpu_custom_call.1} parent=1 // pred_check_branch
      %13 = sbr.rel (0) target = $region9
    $region8: #{tpu_custom_call.1} parent=1 // pred_region
      %s15 = ssub.s32 1280, 1280
      %16 = vsyncadd [#allocation3], %s15
      %s17 = sshll.u32 [#allocation2], 4
      %s18 = int_to_ptr.vmem [resolvable:$true] %s17
      %23 = dma.hbm_to_vmem [thread:$0]  %s1, 1280, %s18, [#allocation3], 256, 256, 16
    $region9: #{tpu_custom_call.1} parent=1 // pred_fallthru
      _
    // Predicated region
    $region10: #{tpu_custom_call.1} parent=1 // pred_check
      _
    $region11: #{tpu_custom_call.1} parent=1 // pred_check_branch
      %25 = sbr.rel (0) target = $region13
    $region12: #{tpu_custom_call.1} parent=1 // pred_region
      _
    $region13: #{tpu_custom_call.1} parent=1 // pred_fallthru
      _
    // Predicated region
    $region14: #{tpu_custom_call.1} parent=1 // pred_check
      _
    $region15: #{tpu_custom_call.1} parent=1 // pred_check_branch
      %27 = sbr.rel (0) target = $region17
    $region16: #{tpu_custom_call.1} parent=1 // pred_region
      %28 = dma.done [#allocation3], 1280
    $region17: #{tpu_custom_call.1} parent=1 // pred_fallthru
      _
    %v30 = vld [vmem:[%s0] sm:$0xf]
    %v31 = vld [vmem:[#allocation2] sm:$0xff]
    %v32 = vld [vmem:[#allocation2 + $0x8] sm:$0xff]
    %v33 = vld [vmem:[#allocation2 + $0x10] sm:$0xff]
    %v34 = vld [vmem:[#allocation2 + $0x18] sm:$0xff]
    %v35 = vld [vmem:[#allocation2 + $0x20] sm:$0xff]
    %v36 = vld [vmem:[#allocation2 + $0x28] sm:$0xff]
    %v37 = vld [vmem:[#allocation2 + $0x30] sm:$0xff]
    %v38 = vld [vmem:[#allocation2 + $0x38] sm:$0xff]
    %v39 = vld [vmem:[#allocation2 + $0x40] sm:$0x33]
    %v40 = vld [vmem:[#allocation2 + $0x48] sm:$0x33]
    %v41 = vld [vmem:[%s2] sm:$0xff]
    %43 = vset.pattern.permute.xlu0 2
    %44 = vperm.xlu0 %43, %v41
    %v45 = vpop.permute.xlu0 %44
    %v57 = vunpack.c.l.b16 %v31
    %v58 = vunpack.c.h.b16 %v31
    %v59 = vunpack.c.l.b16 %v32
    %v60 = vunpack.c.h.b16 %v32
    %v61 = vunpack.c.l.b16 %v33
    %v62 = vunpack.c.h.b16 %v33
    %v63 = vunpack.c.l.b16 %v34
    %v64 = vunpack.c.h.b16 %v34
    %v65 = vunpack.c.l.b16 %v35
    %v66 = vunpack.c.h.b16 %v35
    %v67 = vunpack.c.l.b16 %v36
    %v68 = vunpack.c.h.b16 %v36
    %v69 = vunpack.c.l.b16 %v37
    %v70 = vunpack.c.h.b16 %v37
    %v71 = vunpack.c.l.b16 %v38
    %v72 = vunpack.c.h.b16 %v38
    %v73 = vunpack.c.l.b16 %v39
    %v74 = vunpack.c.h.b16 %v39
    %v75 = vunpack.c.l.b16 %v40
    %v76 = vunpack.c.h.b16 %v40
    %v77 = vpack.c.b16 %v61, %v57
    %v78 = vpack.c.b16 %v62, %v58
    %v79 = vpack.c.b16 %v63, %v59
    %v80 = vpack.c.b16 %v64, %v60
    %v81 = vpack.c.b16 %v69, %v65
    %v82 = vpack.c.b16 %v70, %v66
    %v83 = vpack.c.b16 %v71, %v67
    %v84 = vpack.c.b16 %v72, %v68
    %v85 = vpack.c.b16 %v73, %v73
    %v86 = vpack.c.b16 %v74, %v74
    %v87 = vpack.c.b16 %v75, %v75
    %v88 = vpack.c.b16 %v76, %v76
    %vm97 = vcmask 293888
    %v99 = vsel %vm97, %v30, 0
    %vm101 = vcmask 1041408
    %v103 = vsel %vm101, %v85, 0
    %v106 = vsel %vm101, %v86, 0
    %v109 = vsel %vm101, %v87, 0
    %v112 = vsel %vm101, %v88, 0
    %114 = vmatprep.subr.bf16.mxu0 %v78
    %115 = vmatpush1.bf16.msra.mxu0 %v77
    %116 = vmatprep.subr.bf16.mxu0 %v82
    %117 = vmatpush1.bf16.msra.mxu0 %v81
    %118 = vmatprep.subr.bf16.mxu0 %v106
    %119 = vmatpush1.bf16.msra.mxu0 %v103
    %120 = vmatprep.subr.bf16.mxu0 0
    %121 = vmatpush1.bf16.msra.mxu0 0
    %122 = vmatprep.subr.bf16.mxu0 0
    %123 = vmatpush1.bf16.msra.mxu0 0
    %124 = vmatprep.subr.bf16.mxu0 0
    %125 = vmatpush1.bf16.msra.mxu0 0
    %126 = vmatprep.subr.bf16.mxu0 0
    %127 = vmatpush1.bf16.msra.mxu0 0
    %128 = vmatprep.subr.bf16.mxu0 0
    %129 = vmatpush1.bf16.msra.mxu0 0
    %130 = vmatprep.subr.bf16.mxu0 0
    %131 = vmatpush1.bf16.msra.mxu0 0
    %132 = vmatprep.subr.bf16.mxu0 0
    %133 = vmatpush1.bf16.msra.mxu0 0
    %134 = vmatprep.subr.bf16.mxu0 0
    %135 = vmatpush1.bf16.msra.mxu0 0
    %136 = vmatprep.subr.bf16.mxu0 0
    %137 = vmatpush1.bf16.msra.mxu0 0
    %138 = vmatprep.subr.bf16.mxu0 0
    %139 = vmatpush1.bf16.msra.mxu0 0
    %140 = vmatprep.subr.bf16.mxu0 0
    %141 = vmatpush1.bf16.msra.mxu0 0
    %142 = vmatprep.subr.bf16.mxu0 0
    %143 = vmatpush1.bf16.msra.mxu0 0
    %144 = vmatprep.subr.bf16.mxu0 0
    %145 = vmatpush1.bf16.msra.mxu0 0
    %146 = vmatprep.mubr.bf16.mxu0 0
    %147 = vmatmul.mubr.bf16.gmra.mrb[0].mxu0 %v99
    %v148 = vpop.f32.mrb[0].mxu0
    %v149 = vadd.f32 %v45, %v148
    %v150 = vpop.f32.mrb[0].mxu0
    %v151 = vadd.f32 %v45, %v150
    %v152 = vpop.f32.mrb[0].mxu0
    %v153 = vpop.f32.mrb[0].mxu0
    %154 = vdwg.mxu0
    %155 = vmatprep.subr.bf16.mxu0 %v80
    %156 = vmatpush1.bf16.msra.mxu0 %v79
    %157 = vmatprep.subr.bf16.mxu0 %v84
    %158 = vmatpush1.bf16.msra.mxu0 %v83
    %159 = vmatprep.subr.bf16.mxu0 %v112
    %160 = vmatpush1.bf16.msra.mxu0 %v109
    %161 = vmatprep.subr.bf16.mxu0 0
    %162 = vmatpush1.bf16.msra.mxu0 0
    %163 = vmatprep.subr.bf16.mxu0 0
    %164 = vmatpush1.bf16.msra.mxu0 0
    %165 = vmatprep.subr.bf16.mxu0 0
    %166 = vmatpush1.bf16.msra.mxu0 0
    %167 = vmatprep.subr.bf16.mxu0 0
    %168 = vmatpush1.bf16.msra.mxu0 0
    %169 = vmatprep.subr.bf16.mxu0 0
    %170 = vmatpush1.bf16.msra.mxu0 0
    %171 = vmatprep.subr.bf16.mxu0 0
    %172 = vmatpush1.bf16.msra.mxu0 0
    %173 = vmatprep.subr.bf16.mxu0 0
    %174 = vmatpush1.bf16.msra.mxu0 0
    %175 = vmatprep.subr.bf16.mxu0 0
    %176 = vmatpush1.bf16.msra.mxu0 0
    %177 = vmatprep.subr.bf16.mxu0 0
    %178 = vmatpush1.bf16.msra.mxu0 0
    %179 = vmatprep.subr.bf16.mxu0 0
    %180 = vmatpush1.bf16.msra.mxu0 0
    %181 = vmatprep.subr.bf16.mxu0 0
    %182 = vmatpush1.bf16.msra.mxu0 0
    %183 = vmatprep.subr.bf16.mxu0 0
    %184 = vmatpush1.bf16.msra.mxu0 0
    %185 = vmatprep.subr.bf16.mxu0 0
    %186 = vmatpush1.bf16.msra.mxu0 0
    %187 = vmatprep.mubr.bf16.mxu0 0
    %188 = vmatmul.mubr.bf16.gmra.mrb[0].mxu0 %v99
    %v189 = vpop.f32.mrb[0].mxu0
    %v190 = vadd.f32 %v45, %v189
    %v191 = vpop.f32.mrb[0].mxu0
    %v192 = vadd.f32 %v45, %v191
    %v193 = vpop.f32.mrb[0].mxu0
    %v194 = vpop.f32.mrb[0].mxu0
    %195 = vdwg.mxu0
    %v196 = vadd.f32 %v149, %v151
    %v197 = vadd.f32 %v196, %v190
    %v198 = vadd.f32 %v197, %v192
    %199 = vadd.xlane.f32.xlu0 %v198
    %v200 = vpop.xlane.xlu0 %199
    %v201 = vmul.f32 %v200, 0.001953125
    %v202 = vmul.f32 %v149, %v149
    %v203 = vmul.f32 %v151, %v151
    %v204 = vmul.f32 %v190, %v190
    %v205 = vmul.f32 %v192, %v192
    %v206 = vadd.f32 %v202, %v203
    %v207 = vadd.f32 %v206, %v204
    %v208 = vadd.f32 %v207, %v205
    %209 = vadd.xlane.f32.xlu0 %v208
    %v210 = vpop.xlane.xlu0 %209
    %v211 = vmul.f32 %v210, 0.001953125
    %v212 = vmul.f32 %v201, %v201
    %v213 = vsub.f32 %v211, %v212
    %v214 = vadd.f32 %v213, 1e-05
    %v215 = vrsqrt.pop %v214
    %v216 = vmul.f32 %v41, %v215
    %v217 = vmul.f32 %v201, %v216
    %219 = vrot.lane.b32.xlu0 %v217, 1
    %v220 = vpop.permute.xlu0 %219
    %v222 = vsub.f32 %v41, %v220
    %224 = vset.pattern.permute.xlu0 0
    %225 = vperm.xlu0 %224, %v216
    %v226 = vpop.permute.xlu0 %225
    %v228 = vmul.f32 %v149, %v226
    %v229 = vmul.f32 %v151, %v226
    %v230 = vmul.f32 %v190, %v226
    %v231 = vmul.f32 %v192, %v226
    %233 = vset.pattern.permute.xlu0 1
    %234 = vperm.xlu0 %233, %v222
    %v235 = vpop.permute.xlu0 %234
    %v237 = vadd.f32 %v228, %v235
    %v238 = vadd.f32 %v229, %v235
    %v239 = vadd.f32 %v230, %v235
    %v240 = vadd.f32 %v231, %v235
    %v241 = vmax.f32 %v237, 0.0
    %v242 = vmax.f32 %v238, 0.0
    %v243 = vmax.f32 %v239, 0.0
    %v244 = vmax.f32 %v240, 0.0
    %245 = vst [vmem:[#allocation5] sm:$0xff] %v241
    %246 = vst [vmem:[#allocation5 + $0x8] sm:$0xff] %v242
    %s247 = scalar_lea.vmem [#allocation5], 16
    %248 = vst [vmem:[%s247] sm:$0xff] %v243
    %249 = vst [vmem:[%s247 + $0x8] sm:$0xff] %v244
    // Predicated region
    $region18: #{tpu_custom_call.1} parent=1 // pred_check
      _
    $region19: #{tpu_custom_call.1} parent=1 // pred_check_branch
      %251 = sbr.rel (0) target = $region21
    $region20: #{tpu_custom_call.1} parent=1 // pred_region
      %s253 = ssub.s32 512, 512
      %254 = vsyncadd [#allocation4], %s253
      %s255 = sshll.u32 [#allocation5], 4
      %s256 = int_to_ptr.vmem [resolvable:$true] %s255
      %261 = dma.vmem_to_hbm [thread:$0]  %s256, 512, %s3, [#allocation4], 256, 256, 16
    $region21: #{tpu_custom_call.1} parent=1 // pred_fallthru
      _
    // Predicated region
    $region22: #{tpu_custom_call.1} parent=1 // pred_check
      _
    $region23: #{tpu_custom_call.1} parent=1 // pred_check_branch
      %263 = sbr.rel (0) target = $region25
    $region24: #{tpu_custom_call.1} parent=1 // pred_region
      %264 = dma.done [#allocation4], 512
    $region25: #{tpu_custom_call.1} parent=1 // pred_fallthru
      _
    %265 = vsyncpa [#allocation3], 1
    %266 = vsyncpa [#allocation4], 1

</llo_original>
